<compile_context>
chip_gen: v6e
topology: v6e:2x2x1
jax: 0.10.0
libtpu: 0.0.40
codegen_flags: <defaults>
</compile_context>

<pallas_src>
import math
import functools

import jax
import jax.numpy as jnp
from jax import lax
from jax.experimental import pallas as pl
from jax.experimental.pallas import tpu as pltpu


def make_positional_encoding(d_model: int, max_len: int = 5000) -> jnp.ndarray:
    """Builds the sinusoidal PE buffer, shape [max_len, 1, d_model] (fp32)."""
    pos = jnp.arange(max_len, dtype=jnp.float32)[:, None]                 # [L, 1]
    div = jnp.exp(
        jnp.arange(0, d_model, 2, dtype=jnp.float32) * (-math.log(10000.0) / d_model)
    )                                                                     # [D/2]
    ang = pos * div                                                       # [L, D/2]
    # interleave: even cols = sin, odd cols = cos
    pe = jnp.stack([jnp.sin(ang), jnp.cos(ang)], axis=-1).reshape(max_len, d_model)
    return pe[:, None, :]                                                 # [L, 1, D]


def _choose_tile_rows(n_rows: int, row_bytes: int, target_bytes: int = 2 << 20) -> int:
    """Pick the tile row count: ~target_bytes per x tile, multiple of 8 (or full)."""
    ts = max(1, target_bytes // max(row_bytes, 1))
    if ts >= n_rows or n_rows <= 8:
        return n_rows            # full extent (always legal as a block dim)
    ts = max(8, (ts // 8) * 8)   # keep sublane dim a multiple of 8
    return min(ts, n_rows)


def _pe_kernel(seed_ref, x_ref, pe_ref, o_ref, *, p: float, training: bool,
               batch: int, tile_rows: int):
    # x_ref/o_ref: (TS, B*D) lane-dense tiles; pe_ref: (TS, D) for the same rows.
    pe_b = jnp.tile(pe_ref[...], (1, batch))          # (TS, B*D): repeat over batch
    y = x_ref[...] + pe_b

    if training and p > 0.0:
        # Inverted dropout with a stateless per-element hash PRNG (murmur-style
        # finalizer): pure VPU int ops, portable to interpret mode, and hidden
        # under the HBM DMA bottleneck.
        shape = y.shape
        rows = lax.broadcasted_iota(jnp.int32, shape, 0)
        cols = lax.broadcasted_iota(jnp.int32, shape, 1)
        row0 = pl.program_id(0) * tile_rows
        gid = ((row0 + rows) * shape[1] + cols).astype(jnp.uint32)  # global elem id
        h = gid ^ (seed_ref[0].astype(jnp.uint32) * jnp.uint32(0x9E3779B9))
        h = h ^ (h >> 16)
        h = h * jnp.uint32(0x7FEB352D)
        h = h ^ (h >> 15)
        h = h * jnp.uint32(0x846CA68B)
        h = h ^ (h >> 16)
        thresh = jnp.uint32(min(int(round(p * 2.0 ** 32)), 2 ** 32 - 1))
        keep = h >= thresh
        y = jnp.where(keep, y * (1.0 / (1.0 - p)), jnp.zeros_like(y))

    o_ref[...] = y.astype(o_ref.dtype)


def positional_encoding_forward(
    x: jnp.ndarray,
    pe: jnp.ndarray,
    *,
    p: float = 0.1,
    training: bool = False,
    seed: int = 0,
) -> jnp.ndarray:
    """x: [S, B, D] -> [S, B, D] ;  pe: [max_len, 1, D]."""
    S, B, D = x.shape
    p = float(p)
    if training and p >= 1.0:
        # Dropout with p=1 zeroes everything (avoid inf scale in-kernel).
        return jnp.zeros_like(x)
    if p < 0.0:
        p = 0.0

    # Lane-dense 2D views: x -> [S, B*D], pe slice -> [S, D] cast to x.dtype.
    x2 = x.reshape(S, B * D)
    pe2 = pe[:S, 0, :].astype(x.dtype)

    ts = _choose_tile_rows(S, B * D * x.dtype.itemsize)
    grid = (pl.cdiv(S, ts),)
    seed_arr = jnp.array([seed], dtype=jnp.int32)

    kernel = functools.partial(
        _pe_kernel, p=p, training=bool(training), batch=B, tile_rows=ts
    )

    out2 = pl.pallas_call(
        kernel,
        out_shape=jax.ShapeDtypeStruct((S, B * D), x.dtype),
        grid=grid,
        in_specs=[
            pl.BlockSpec(memory_space=pltpu.MemorySpace.SMEM),     # seed scalar
            pl.BlockSpec((ts, B * D), lambda s: (s, 0)),           # x tile
            pl.BlockSpec((ts, D), lambda s: (s, 0)),               # pe tile
        ],
        out_specs=pl.BlockSpec((ts, B * D), lambda s: (s, 0)),
        compiler_params=pltpu.CompilerParams(
            # All tiles independent -> shard across both TCs on v7x; neutral on
            # v5e/v6e.  ~2 MiB tiles keep the double-buffered footprint well
            # under the 16/32 MiB scoped-VMEM defaults, so no vmem_limit needed.
            dimension_semantics=("parallel",),
        ),
    )(seed_arr, x2, pe2)

    return out2.reshape(S, B, D)


if __name__ == "__main__":
    # Small shapes consistent with the module: seq=8, batch=2, d_model=32.
    S, B, D = 8, 2, 32
    MAX_LEN = 64
    P = 0.1

    key = jax.random.PRNGKey(0)
    x = jax.random.normal(key, (S, B, D), dtype=jnp.float32)

    pe = make_positional_encoding(D, MAX_LEN)
    ref = x + pe[:S]

    # Eval-mode forward (dropout is identity), matching module.eval() semantics.
    out = positional_encoding_forward(x, pe, p=P, training=False)
    out = jax.block_until_ready(out)
    assert out.shape == (S, B, D)
    assert jnp.allclose(out, ref, atol=1e-6, rtol=1e-6), "eval mismatch vs reference"

    # Training-mode dropout: every output element must be either 0 (dropped) or
    # the reference value scaled by 1/(1-p) (kept).
    out_train = positional_encoding_forward(x, pe, p=P, training=True, seed=1234)
    out_train = jax.block_until_ready(out_train)
    scale = 1.0 / (1.0 - P)
    ok = jnp.logical_or(
        jnp.isclose(out_train, 0.0, atol=1e-6),
        jnp.isclose(out_train, ref * scale, atol=1e-5, rtol=1e-5),
    )
    assert bool(jnp.all(ok)), "dropout output is not {0, ref/(1-p)}"
    assert bool(jnp.isfinite(out_train).all())

    print("KERNEL_OK")
</pallas_src>

<mosaic_0001>
module attributes {stable_mosaic.version = 11 : i64} {
  func.func @_pe_kernel(%arg0: i32, %arg1: memref<1xi32, #tpu.memory_space<smem>>, %arg2: memref<8x64xf32, #tpu.memory_space<vmem>>, %arg3: memref<8x32xf32, #tpu.memory_space<vmem>>, %arg4: memref<8x64xf32, #tpu.memory_space<vmem>>) attributes {dimension_semantics = [#tpu.dimension_semantics<parallel>], iteration_bounds = array<i64: 1>, scalar_prefetch = 0 : i64, scratch_operands = 0 : i64, tpu.core_type = #tpu.core_type<tc>, window_params = [{transform_indices = @transform_0, window_bounds = array<i64: 1>}, {transform_indices = @transform_1, window_bounds = array<i64: 8, 64>}, {transform_indices = @transform_2, window_bounds = array<i64: 8, 32>}, {transform_indices = @transform_3, window_bounds = array<i64: 8, 64>}]} {
    %c0 = arith.constant 0 : index
    %c0_0 = arith.constant 0 : index
    %0 = vector.load %arg3[%c0, %c0_0] : memref<8x32xf32, #tpu.memory_space<vmem>>, vector<8x32xf32>
    %1 = tpu.concatenate %0, %0 in 1 : vector<8x32xf32>, vector<8x32xf32> -> vector<8x64xf32>
    %c0_1 = arith.constant 0 : index
    %c0_2 = arith.constant 0 : index
    %2 = vector.load %arg2[%c0_1, %c0_2] : memref<8x64xf32, #tpu.memory_space<vmem>>, vector<8x64xf32>
    %3 = arith.addf %2, %1 : vector<8x64xf32>
    %c0_3 = arith.constant 0 : index
    %c0_4 = arith.constant 0 : index
    %4 = vector.load %arg4[%c0_3, %c0_4] : memref<8x64xf32, #tpu.memory_space<vmem>>, vector<8x64xf32>
    tpu.vector_store %arg4[%c0_3, %c0_4], %3 {strides = array<i32>} : memref<8x64xf32, #tpu.memory_space<vmem>>, vector<8x64xf32>,
    return
  }
  func.func @transform_0(%arg0: i32) -> i32 {
    %c0_i32 = arith.constant 0 : i32
    %c0_i32_0 = arith.constant 0 : i32
    return %c0_i32 : i32
  }
  func.func @transform_1(%arg0: i32) -> (i32, i32) {
    %c0_i32 = arith.constant 0 : i32
    %c0_i32_0 = arith.constant 0 : i32
    return %arg0, %c0_i32 : i32, i32
  }
  func.func @transform_2(%arg0: i32) -> (i32, i32) {
    %c0_i32 = arith.constant 0 : i32
    %c0_i32_0 = arith.constant 0 : i32
    return %arg0, %c0_i32 : i32, i32
  }
  func.func @transform_3(%arg0: i32) -> (i32, i32) {
    %c0_i32 = arith.constant 0 : i32
    %c0_i32_0 = arith.constant 0 : i32
    return %arg0, %c0_i32 : i32, i32
  }
}

</mosaic_0001>

<llo_original>
// kernel: tpu_custom_call.1
$region0: #{tpu_custom_call.1}
  #allocation0 [shape = 'u32[]', space=smem, size = 0x4, offset = 0x4, fixed_abs, tag = 'smem constant byte address 0x4 - core index']
  #allocation1 [shape = 'u32[144,128]{1,0:T(1,128)}', space=vmem, size = 0x12000, scoped, tag = 'internal scratch']
  #allocation2 [shape = 's32[1]{0:T(128)S(6)}', space=smem, size = 0x200, scoped, tag = 'scoped memory for tpu_custom_call.1']
  %s0 = inlined_call_operand.<no memory space> [shape: s32[1], index: 0, kind: input, shape index: {}]
  %s1 = inlined_call_operand.hbm [shape: f32[8,64], index: 1, kind: input, shape index: {}]
  %s2 = inlined_call_operand.hbm [shape: f32[8,32], index: 2, kind: input, shape index: {}]
  %s3 = inlined_call_operand.hbm [shape: f32[8,64], index: 3, kind: output, shape index: {}]
  %s4 = sld [smem:[#allocation0]]
  $region30: #{tpu_custom_call.1} parent=0
    _
  %s6 = ssub.s32 1, %s4
  %s7 = scalar_select 0, %s6, %s4
  %8 = sst [smem:[#allocation2]] %s0
  $region1: #{tpu_custom_call.1} parent=0
    #allocation3 [shape = 'u8[4096]{0}', space=vmem, size = 0x1000, scoped, tag = 'input window, operand 1, single buffered']
    #allocation4 [shape = 's32[1]{0}', space=sflag, size = 0x4, scoped, tag = 'scoped memory for tpu_custom_call.1']
    #allocation5 [shape = 's32[1]{0}', space=sflag, size = 0x4, scoped, tag = 'scoped memory for tpu_custom_call.1']
    #allocation6 [shape = 'u8[4096]{0}', space=vmem, size = 0x1000, scoped, tag = 'input window, operand 2, single buffered']
    #allocation7 [shape = 's32[1]{0}', space=sflag, size = 0x4, scoped, tag = 'scoped memory for tpu_custom_call.1']
    #allocation8 [shape = 'u8[4096]{0}', space=vmem, size = 0x1000, scoped, tag = 'output window, operand 0, single buffered']
    %9 = vsyncpa [#allocation4], 0
    %10 = vsyncpa [#allocation7], 0
    %11 = vsyncpa [#allocation5], 0
    // Predicated region
    $region2: #{tpu_custom_call.1} parent=1 // pred_check
      _
    $region3: #{tpu_custom_call.1} parent=1 // pred_check_branch
      %13 = sbr.rel (0) target = $region5
    $region4: #{tpu_custom_call.1} parent=1 // pred_region
      _
    $region5: #{tpu_custom_call.1} parent=1 // pred_fallthru
      _
    // Predicated region
    $region6: #{tpu_custom_call.1} parent=1 // pred_check
      _
    $region7: #{tpu_custom_call.1} parent=1 // pred_check_branch
      %15 = sbr.rel (0) target = $region9
    $region8: #{tpu_custom_call.1} parent=1 // pred_region
      %s17 = ssub.s32 128, 128
      %18 = vsyncadd [#allocation4], %s17
      %s20 = sshll.u32 [#allocation3], 4
      %s21 = int_to_ptr.vmem [resolvable:$true] %s20
      %23 = dma.hbm_to_vmem [thread:$0]  %s1, 128, %s21, [#allocation4]
    $region9: #{tpu_custom_call.1} parent=1 // pred_fallthru
      _
    // Predicated region
    $region10: #{tpu_custom_call.1} parent=1 // pred_check
      _
    $region11: #{tpu_custom_call.1} parent=1 // pred_check_branch
      %25 = sbr.rel (0) target = $region13
    $region12: #{tpu_custom_call.1} parent=1 // pred_region
      %s27 = ssub.s32 128, 128
      %28 = vsyncadd [#allocation7], %s27
      %s30 = sshll.u32 [#allocation6], 4
      %s31 = int_to_ptr.vmem [resolvable:$true] %s30
      %33 = dma.hbm_to_vmem [thread:$0]  %s2, 128, %s31, [#allocation7]
    $region13: #{tpu_custom_call.1} parent=1 // pred_fallthru
      _
    // Predicated region
    $region14: #{tpu_custom_call.1} parent=1 // pred_check
      _
    $region15: #{tpu_custom_call.1} parent=1 // pred_check_branch
      %35 = sbr.rel (0) target = $region17
    $region16: #{tpu_custom_call.1} parent=1 // pred_region
      %36 = dma.done [#allocation4], 128
    $region17: #{tpu_custom_call.1} parent=1 // pred_fallthru
      _
    // Predicated region
    $region18: #{tpu_custom_call.1} parent=1 // pred_check
      _
    $region19: #{tpu_custom_call.1} parent=1 // pred_check_branch
      %38 = sbr.rel (0) target = $region21
    $region20: #{tpu_custom_call.1} parent=1 // pred_region
      %39 = dma.done [#allocation7], 128
    $region21: #{tpu_custom_call.1} parent=1 // pred_fallthru
      _
    %v40 = vld [vmem:[#allocation6] sm:$0xff]
    %42 = vrot.lane.b32.xlu0 %v40, 32
    %v43 = vpop.permute.xlu0 %42
    %vm45 = vcmask 261120
    %v46 = vsel %vm45, %v40, %v43
    %v47 = vld [vmem:[#allocation3] sm:$0xff]
    %v48 = vadd.f32 %v47, %v46
    %vm49 = vcmask 523264
    %50 = vst.msk [vmem:[#allocation8] sm:$0xff] %vm49, %v48
    // Predicated region
    $region22: #{tpu_custom_call.1} parent=1 // pred_check
      _
    $region23: #{tpu_custom_call.1} parent=1 // pred_check_branch
      %52 = sbr.rel (0) target = $region25
    $region24: #{tpu_custom_call.1} parent=1 // pred_region
      %s54 = ssub.s32 128, 128
      %55 = vsyncadd [#allocation5], %s54
      %s57 = sshll.u32 [#allocation8], 4
      %s58 = int_to_ptr.vmem [resolvable:$true] %s57
      %60 = dma.vmem_to_hbm [thread:$0]  %s58, 128, %s3, [#allocation5]
    $region25: #{tpu_custom_call.1} parent=1 // pred_fallthru
      _
    // Predicated region
    $region26: #{tpu_custom_call.1} parent=1 // pred_check
      _
    $region27: #{tpu_custom_call.1} parent=1 // pred_check_branch
      %62 = sbr.rel (0) target = $region29
    $region28: #{tpu_custom_call.1} parent=1 // pred_region
      %63 = dma.done [#allocation5], 128
    $region29: #{tpu_custom_call.1} parent=1 // pred_fallthru
      _
    %64 = vsyncpa [#allocation4], 1
    %65 = vsyncpa [#allocation7], 1
    %66 = vsyncpa [#allocation5], 1

</llo_original>
